<compile_context>
chip_gen: v5e
topology: v5e:2x2
jax: 0.10.0
libtpu: 0.0.40
codegen_flags: <defaults>
</compile_context>

<pallas_src>
import jax
import jax.numpy as jnp
from jax.experimental import pallas as pl
from jax.experimental.pallas import tpu as pltpu


_F = 8       # feature size of both Linear(8, 8) layers
_P = 4       # trailing positional axis of the (B, 8, 4) input
_LANES = 128  # lane width of one kernel block (= 4 flattened (8,4) slabs)


def _residual_matmul_kernel(m_ref, x_ref, o_ref):
    # m_ref: (128, 128) resident block-diagonal weight kron(I_4, (W2@W1)^T ⊗ I_4)
    # x_ref: (tile_rows, 128) lane-dense block of the flattened input
    # o_ref: (tile_rows, 128) output block: x + x @ M (exact residual add)
    o_ref[...] = (
        x_ref[...]
        + jnp.dot(x_ref[...], m_ref[...], preferred_element_type=jnp.float32)
    ).astype(o_ref.dtype)


def _choose_tile_rows(rows: int, target_bytes: int = 1 << 20) -> int:
    """Sublane tile: multiple of 8 dividing `rows` (or the full extent), large
    enough (~1 MiB) to amortize per-step overhead, small enough to leave >= 2
    grid steps for v7x megacore when the array is splittable."""
    if rows % 8 != 0:
        return rows                       # single full block (still valid)
    target = min(rows, max(8, target_bytes // (_LANES * 4)))
    if rows >= 16:
        target = min(target, rows // 2)   # >= 2 parallel steps when possible
    t = max(8, (target // 8) * 8)
    while t > 8 and rows % t:
        t -= 8
    return t if rows % t == 0 else rows


def model_forward(x, w1, w2, *, min_pallas_elems=8192, tile_target_bytes=1 << 20):
    """out = x + (W2 @ W1) @ x along the size-8 feature axis."""
    B, F, P = x.shape
    assert (F, P) == (_F, _P)
    assert w1.shape == (F, F) and w2.shape == (F, F)

    hp = jax.lax.Precision.HIGHEST
    w21 = jnp.dot(w2.astype(jnp.float32), w1.astype(jnp.float32), precision=hp)

    n_elems = B * F * P
    slabs_per_row = _LANES // (F * P)     # 4 batches per 128-lane row

    # Tiny inputs / non-packable batches: fused XLA beats a custom call.
    if n_elems < min_pallas_elems or B % slabs_per_row != 0:
        corr = jnp.einsum("fg,bgp->bfp", w21, x.astype(jnp.float32), precision=hp)
        return (x.astype(jnp.float32) + corr).astype(x.dtype)

    # Free (bitcast) reshape: each 128-lane row = 4 consecutive batches' (8,4) slabs.
    rows = n_elems // _LANES
    x2 = x.reshape(rows, _LANES)

    # Fold feature matmul + batch/position flattening into one resident weight.
    m32 = jnp.kron(w21.T, jnp.eye(P, dtype=jnp.float32))            # (32, 32)
    m = jnp.kron(jnp.eye(slabs_per_row, dtype=jnp.float32), m32)     # (128, 128)
    m = m.astype(x.dtype)

    tile_rows = _choose_tile_rows(rows, tile_target_bytes)
    grid = (rows // tile_rows,)

    out2 = pl.pallas_call(
        _residual_matmul_kernel,
        out_shape=jax.ShapeDtypeStruct((rows, _LANES), x.dtype),
        grid=grid,
        in_specs=[
            # (128,128) weight: constant index_map -> loaded once, stays resident.
            pl.BlockSpec((_LANES, _LANES), lambda i: (0, 0)),
            pl.BlockSpec((tile_rows, _LANES), lambda i: (i, 0)),
        ],
        out_specs=pl.BlockSpec((tile_rows, _LANES), lambda i: (i, 0)),
        compiler_params=pltpu.CompilerParams(
            dimension_semantics=("parallel",),
        ),
    )(m, x2)

    return out2.reshape(B, F, P)          # free reshape back


def model_forward_ref(x, w1, w2):
    """Pure-JAX reference of the interpreted semantics (full f32 precision)."""
    hp = jax.lax.Precision.HIGHEST
    v1 = jnp.transpose(x, (0, 2, 1))                            # (B, P, F)
    v2 = jnp.einsum("bpf,gf->bpg", v1, w1, precision=hp)        # linear1
    v4 = jnp.einsum("bpf,gf->bpg", v2, w2, precision=hp)        # linear2
    return x + jnp.transpose(v4, (0, 2, 1))


if __name__ == "__main__":
    key = jax.random.PRNGKey(0)
    kw1, kw2, kx1, kx2 = jax.random.split(key, 4)

    # Deterministic "Linear(8, 8, bias=False)" weights (out_features, in_features).
    w1 = jax.random.normal(kw1, (_F, _F), dtype=jnp.float32) * 0.1
    w2 = jax.random.normal(kw2, (_F, _F), dtype=jnp.float32) * 0.1

    # Case 1: the module's native shape (1, 8, 4) -> fused-XLA fast path.
    x_small = jax.random.normal(kx1, (1, _F, _P), dtype=jnp.float32)
    out_small = jax.block_until_ready(model_forward(x_small, w1, w2))
    ref_small = model_forward_ref(x_small, w1, w2)
    assert out_small.shape == (1, _F, _P)
    assert jnp.allclose(out_small, ref_small, atol=1e-5, rtol=1e-5), \
        "mismatch vs reference (small / XLA path)"

    # Case 2: batched input -> Pallas kernel (lane-dense blocks, 2 parallel steps).
    B = 1024
    x_big = jax.random.normal(kx2, (B, _F, _P), dtype=jnp.float32)
    out_big = jax.block_until_ready(model_forward(x_big, w1, w2))
    ref_big = model_forward_ref(x_big, w1, w2)
    assert out_big.shape == (B, _F, _P)
    # Tolerance leaves headroom for possible bf16 MXU passes of the in-kernel
    # f32 dot; the residual is added exactly, so the correction term is tiny
    # and structural errors would be O(0.1-1).
    assert jnp.allclose(out_big, ref_big, atol=1e-2, rtol=1e-2), \
        "mismatch vs reference (batched / Pallas path)"

    print("KERNEL_OK")
</pallas_src>

<mosaic_0001>
module attributes {stable_mosaic.version = 11 : i64} {
  func.func @_residual_matmul_kernel(%arg0: i32, %arg1: memref<128x128xf32, #tpu.memory_space<vmem>>, %arg2: memref<128x128xf32, #tpu.memory_space<vmem>>, %arg3: memref<128x128xf32, #tpu.memory_space<vmem>>) attributes {dimension_semantics = [#tpu.dimension_semantics<parallel>], iteration_bounds = array<i64: 2>, scalar_prefetch = 0 : i64, scratch_operands = 0 : i64, tpu.core_type = #tpu.core_type<tc>, window_params = [{pipeline_mode = #tpu.pipeline_mode<synchronous>, transform_indices = @transform_0, window_bounds = array<i64: 128, 128>}, {transform_indices = @transform_1, window_bounds = array<i64: 128, 128>}, {transform_indices = @transform_2, window_bounds = array<i64: 128, 128>}]} {
    %c0 = arith.constant 0 : index
    %c0_0 = arith.constant 0 : index
    %0 = vector.load %arg2[%c0, %c0_0] : memref<128x128xf32, #tpu.memory_space<vmem>>, vector<128x128xf32>
    %c0_1 = arith.constant 0 : index
    %c0_2 = arith.constant 0 : index
    %1 = vector.load %arg2[%c0_1, %c0_2] : memref<128x128xf32, #tpu.memory_space<vmem>>, vector<128x128xf32>
    %c0_3 = arith.constant 0 : index
    %c0_4 = arith.constant 0 : index
    %2 = vector.load %arg1[%c0_3, %c0_4] : memref<128x128xf32, #tpu.memory_space<vmem>>, vector<128x128xf32>
    %cst = arith.constant dense<0.000000e+00> : vector<128x128xf32>
    %3 = tpu.matmul %1, %2, %cst {dimension_numbers = #tpu.dot_dimension_numbers<[1], [0], [0], [1], [0, 0, 1, 1], [], []>} : vector<128x128xf32>, vector<128x128xf32>, vector<128x128xf32> -> vector<128x128xf32>
    %4 = arith.addf %0, %3 : vector<128x128xf32>
    %c0_5 = arith.constant 0 : index
    %c0_6 = arith.constant 0 : index
    %5 = vector.load %arg3[%c0_5, %c0_6] : memref<128x128xf32, #tpu.memory_space<vmem>>, vector<128x128xf32>
    tpu.vector_store %arg3[%c0_5, %c0_6], %4 {strides = array<i32>} : memref<128x128xf32, #tpu.memory_space<vmem>>, vector<128x128xf32>,
    return
  }
  func.func @transform_0(%arg0: i32) -> (i32, i32) {
    %c0_i32 = arith.constant 0 : i32
    %c0_i32_0 = arith.constant 0 : i32
    %c0_i32_1 = arith.constant 0 : i32
    return %c0_i32, %c0_i32_0 : i32, i32
  }
  func.func @transform_1(%arg0: i32) -> (i32, i32) {
    %c0_i32 = arith.constant 0 : i32
    %c0_i32_0 = arith.constant 0 : i32
    return %arg0, %c0_i32 : i32, i32
  }
  func.func @transform_2(%arg0: i32) -> (i32, i32) {
    %c0_i32 = arith.constant 0 : i32
    %c0_i32_0 = arith.constant 0 : i32
    return %arg0, %c0_i32 : i32, i32
  }
}

</mosaic_0001>

<llo_original>
// kernel: tpu_custom_call.1
$region0: #{tpu_custom_call.1}
  #allocation0 [shape = 'u32[]', space=smem, size = 0x4, offset = 0x4, fixed_abs, tag = 'smem constant byte address 0x4 - core index']
  #allocation1 [shape = 'u32[72,128]{1,0:T(1,128)}', space=vmem, size = 0x9000, scoped, tag = 'internal scratch']
  %s0 = inlined_call_operand.hbm [shape: f32[128,128], index: 0, kind: input, shape index: {}]
  %s1 = inlined_call_operand.hbm [shape: f32[256,128], index: 1, kind: input, shape index: {}]
  %s2 = inlined_call_operand.hbm [shape: f32[256,128], index: 2, kind: output, shape index: {}]
  %s3 = sld [smem:[#allocation0]]
  $region49: #{tpu_custom_call.1} parent=0
    _
  %s5 = ssub.s32 1, %s3
  %s6 = scalar_select 0, %s5, %s3
  $region1: #{tpu_custom_call.1} parent=0
    #allocation2 [shape = 'u8[65536]{0}', space=vmem, size = 0x10000, scoped, tag = 'input window, operand 0, single buffered']
    #allocation3 [shape = 's32[2]{0}', space=sflag, size = 0x8, scoped, tag = 'scoped memory for tpu_custom_call.1']
    #allocation4 [shape = 's32[2]{0}', space=sflag, size = 0x8, scoped, tag = 'scoped memory for tpu_custom_call.1']
    #allocation5 [shape = 'u8[131072]{0}', space=vmem, size = 0x20000, scoped, tag = 'input window, operand 1']
    #allocation6 [shape = 's32[2]{0}', space=sflag, size = 0x8, scoped, tag = 'scoped memory for tpu_custom_call.1']
    #allocation7 [shape = 'u8[131072]{0}', space=vmem, size = 0x20000, scoped, tag = 'output window, operand 0']
    %7 = vsyncpa [#allocation3], 0
    %8 = vsyncpa [#allocation6], 0
    %s9 = scalar_lea.sflag [#allocation6], 1
    %10 = vsyncpa %s9, 0
    %11 = vsyncpa [#allocation4], 0
    %s12 = scalar_lea.sflag [#allocation4], 1
    %13 = vsyncpa %s12, 0
    loop: start=0, step=1, limit=4
    $region2: #{tpu_custom_call.1} parent=1 // loop_pre_header
      _
    $region3: #{tpu_custom_call.1} parent=1 // loop_header
      %s15 = sphi 0, %s19
      %p16 = scmp.ge.s32.totalorder %s15, 4
      %s23 = sphi 0, %s23
      %s25 = sphi 0, %s23
      %s26 = sphi 0, %s25
      %s40 = sphi 0, %s26
      %s46 = sphi 0, %s48
      %s49 = sphi 0, %s46
      %s50 = sphi 0, %s49
      %s66 = sphi 0, %s50
      %s72 = sphi 0, %s74
      %s75 = sphi 0, %s72
      %s76 = sphi 0, %s75
      %s92 = sphi 0, %s76
    $region4: #{tpu_custom_call.1} parent=1 // loop_header_branch
      %18 = sbr.rel (%p16) target = $region8
    $region5: #{tpu_custom_call.1} parent=1 // loop_body
      %s20 = ssub.s32 %s15, 1
      %s21 = ssub.s32 %s15, 2
      %s22 = sadd.s32 %s15, 1
      %s24 = sadd.s32 %s23, 1
      %p27 = scmp.eq.s32.totalorder %s15, 1
      %p28 = scmp.ne.s32.totalorder %s23, %s25
      %p29 = scmp.eq.s32.totalorder %s15, 0
      %p30 = por %p28, %p29
      %p31 = scmp.ne.s32.totalorder %s23, %s25
      %p32 = scmp.eq.s32.totalorder %s20, 1
      %p33 = por %p31, %p32
      %p34 = scmp.ne.s32.totalorder %s25, %s26
      %p35 = scmp.eq.s32.totalorder %s20, 0
      %p36 = por %p34, %p35
      %p37 = scmp.ne.s32.totalorder %s25, %s26
      %p38 = scmp.eq.s32.totalorder %s21, 1
      %p39 = por %p37, %p38
      %p41 = scmp.ne.s32.totalorder %s26, %s40
      %p42 = scmp.eq.s32.totalorder %s21, 0
      %p43 = por %p41, %p42
      %s44 = ssub.s32 %s15, %s22
      %p45 = scmp.eq.s32.totalorder %s44, 0
      %s47 = sadd.s32 %s46, 1
      %s48 = scalar_select %p45, %s46, %s47
      %p51 = pneg %p45
      %p52 = scmp.eq.s32.totalorder %s15, 1
      %p53 = por %p51, %p52
      %p54 = scmp.ne.s32.totalorder %s46, %s49
      %p55 = scmp.eq.s32.totalorder %s15, 0
      %p56 = por %p54, %p55
      %p57 = scmp.ne.s32.totalorder %s46, %s49
      %p58 = scmp.eq.s32.totalorder %s20, 1
      %p59 = por %p57, %p58
      %p60 = scmp.ne.s32.totalorder %s49, %s50
      %p61 = scmp.eq.s32.totalorder %s20, 0
      %p62 = por %p60, %p61
      %p63 = scmp.ne.s32.totalorder %s49, %s50
      %p64 = scmp.eq.s32.totalorder %s21, 1
      %p65 = por %p63, %p64
      %p67 = scmp.ne.s32.totalorder %s50, %s66
      %p68 = scmp.eq.s32.totalorder %s21, 0
      %p69 = por %p67, %p68
      %s70 = ssub.s32 %s15, %s22
      %p71 = scmp.eq.s32.totalorder %s70, 0
      %s73 = sadd.s32 %s72, 1
      %s74 = scalar_select %p71, %s72, %s73
      %p77 = pneg %p71
      %p78 = scmp.eq.s32.totalorder %s15, 1
      %p79 = por %p77, %p78
      %p80 = scmp.ne.s32.totalorder %s72, %s75
      %p81 = scmp.eq.s32.totalorder %s15, 0
      %p82 = por %p80, %p81
      %p83 = scmp.ne.s32.totalorder %s72, %s75
      %p84 = scmp.eq.s32.totalorder %s20, 1
      %p85 = por %p83, %p84
      %p86 = scmp.ne.s32.totalorder %s75, %s76
      %p87 = scmp.eq.s32.totalorder %s20, 0
      %p88 = por %p86, %p87
      %p89 = scmp.ne.s32.totalorder %s75, %s76
      %p90 = scmp.eq.s32.totalorder %s21, 1
      %p91 = por %p89, %p90
      %p93 = scmp.ne.s32.totalorder %s76, %s92
      %p94 = scmp.eq.s32.totalorder %s21, 0
      %p95 = por %p93, %p94
      %p96 = scmp.le.s32.totalorder 1, %s15
      %p97 = scmp.lt.s32.totalorder %s15, 3
      %p98 = pnand %p96, %p97
      %p99 = pneg %p98
      // Predicated region
      $region9: #{tpu_custom_call.1} parent=5 // pred_check
        _
      $region10: #{tpu_custom_call.1} parent=5 // pred_check_branch
        %101 = sbr.rel (%p98) target = $region12
      $region11: #{tpu_custom_call.1} parent=5 // pred_region
        %s102 = ssub.s32 %s15, 1
        // Predicated region
        $region13: #{tpu_custom_call.1} parent=11 // pred_check
          %p103 = pneg %p36
        $region14: #{tpu_custom_call.1} parent=11 // pred_check_branch
          %105 = sbr.rel (%p103) target = $region16
        $region15: #{tpu_custom_call.1} parent=11 // pred_region
          %107 = vsyncadd [#allocation3], 0
          %s108 = sshll.u32 %s0, 4
          %s109 = int_to_ptr.hbm [resolvable:$true] %s108
          %s110 = sshll.u32 [#allocation2], 4
          %s111 = int_to_ptr.vmem [resolvable:$true] %s110
          %116 = dma.hbm_to_vmem [thread:$0]  %s109, 2048, %s111, [#allocation3], 128, 128, 8
        $region16: #{tpu_custom_call.1} parent=11 // pred_fallthru
          _
      $region12: #{tpu_custom_call.1} parent=5 // pred_fallthru
        _
      %p117 = scmp.lt.s32.totalorder %s15, 2
      // Predicated region
      $region17: #{tpu_custom_call.1} parent=5 // pred_check
        %p118 = pneg %p117
      $region18: #{tpu_custom_call.1} parent=5 // pred_check_branch
        %120 = sbr.rel (%p118) target = $region20
      $region19: #{tpu_custom_call.1} parent=5 // pred_region
        // Predicated region
        $region21: #{tpu_custom_call.1} parent=19 // pred_check
          %p121 = pneg %p56
        $region22: #{tpu_custom_call.1} parent=19 // pred_check_branch
          %123 = sbr.rel (%p121) target = $region24
        $region23: #{tpu_custom_call.1} parent=19 // pred_region
          %s124 = sand.u32 %s46, 1
          %s125 = scalar_lea.sflag [#allocation6], %s124
          %s126 = sand.u32 %s46, 1
          %s127 = smul.addr %s126, 128
          %s128 = scalar_lea.vmem [#allocation5], %s127
          %s129 = smul.u32 16, %s15
          %131 = vsyncadd %s125, 0
          %s132 = smul.addr %s129, 8
          %s133 = scalar_lea.hbm %s1, %s132
          %s134 = sshll.u32 %s133, 4
          %s135 = int_to_ptr.hbm [resolvable:$true] %s134
          %s136 = sshll.u32 %s128, 4
          %s137 = int_to_ptr.vmem [resolvable:$true] %s136
          %142 = dma.hbm_to_vmem [thread:$0]  %s135, 2048, %s137, %s125, 128, 128, 8
        $region24: #{tpu_custom_call.1} parent=19 // pred_fallthru
          _
      $region20: #{tpu_custom_call.1} parent=5 // pred_fallthru
        _
      %p143 = scmp.le.s32.totalorder 1, %s15
      %p144 = scmp.lt.s32.totalorder %s15, 3
      %p145 = pnand %p143, %p144
      %p146 = pneg %p145
      // Predicated region
      $region25: #{tpu_custom_call.1} parent=5 // pred_check
        _
      $region26: #{tpu_custom_call.1} parent=5 // pred_check_branch
        %148 = sbr.rel (%p145) target = $region28
      $region27: #{tpu_custom_call.1} parent=5 // pred_region
        %s149 = ssub.s32 %s15, 1
        // Predicated region
        $region29: #{tpu_custom_call.1} parent=27 // pred_check
          %p150 = pneg %p36
        $region30: #{tpu_custom_call.1} parent=27 // pred_check_branch
          %152 = sbr.rel (%p150) target = $region32
        $region31: #{tpu_custom_call.1} parent=27 // pred_region
          %154 = dma.done [#allocation3], 2048
        $region32: #{tpu_custom_call.1} parent=27 // pred_fallthru
          _
        %s155 = sand.u32 %s49, 1
        %s156 = scalar_lea.sflag [#allocation6], %s155
        %s157 = sand.u32 %s49, 1
        %s158 = smul.addr %s157, 128
        %s159 = scalar_lea.vmem [#allocation5], %s158
        // Predicated region
        $region33: #{tpu_custom_call.1} parent=27 // pred_check
          %p160 = pneg %p62
        $region34: #{tpu_custom_call.1} parent=27 // pred_check_branch
          %162 = sbr.rel (%p160) target = $region36
        $region35: #{tpu_custom_call.1} parent=27 // pred_region
          %164 = dma.done %s156, 2048
        $region36: #{tpu_custom_call.1} parent=27 // pred_fallthru
          _
        %p165 = pneg %p36
        %p166 = pneg %p33
        %s167 = sand.u32 %s49, 1
        %s168 = scalar_lea.sflag [#allocation6], %s167
        %s169 = sand.u32 %s49, 1
        %s170 = smul.addr %s169, 128
        %s171 = scalar_lea.vmem [#allocation5], %s170
        %p172 = pneg %p62
        %p173 = pneg %p59
        %p174 = pneg %p88
        %p175 = pneg %p85
        %s176 = sand.u32 %s75, 1
        %s177 = scalar_lea.sflag [#allocation4], %s176
        %s178 = sand.u32 %s75, 1
        %s179 = smul.addr %s178, 128
        %s180 = scalar_lea.vmem [#allocation7], %s179
        %s181 = smul.u32 16, %s20
        %s182 = smul.u32 16, %s20
        %v183 = vld [vmem:[%s159] sm:$0xff]
        %v184 = vld [vmem:[%s159 + $0x8] sm:$0xff]
        %v185 = vld [vmem:[%s159 + $0x10] sm:$0xff]
        %v186 = vld [vmem:[%s159 + $0x18] sm:$0xff]
        %v187 = vld [vmem:[%s159 + $0x20] sm:$0xff]
        %v188 = vld [vmem:[%s159 + $0x28] sm:$0xff]
        %v189 = vld [vmem:[%s159 + $0x30] sm:$0xff]
        %v190 = vld [vmem:[%s159 + $0x38] sm:$0xff]
        %v191 = vld [vmem:[%s159 + $0x40] sm:$0xff]
        %v192 = vld [vmem:[%s159 + $0x48] sm:$0xff]
        %v193 = vld [vmem:[%s159 + $0x50] sm:$0xff]
        %v194 = vld [vmem:[%s159 + $0x58] sm:$0xff]
        %v195 = vld [vmem:[%s159 + $0x60] sm:$0xff]
        %v196 = vld [vmem:[%s159 + $0x68] sm:$0xff]
        %v197 = vld [vmem:[%s159 + $0x70] sm:$0xff]
        %v198 = vld [vmem:[%s159 + $0x78] sm:$0xff]
        %v199 = vld [vmem:[#allocation2] sm:$0xff]
        %v200 = vld [vmem:[#allocation2 + $0x8] sm:$0xff]
        %v201 = vld [vmem:[#allocation2 + $0x10] sm:$0xff]
        %v202 = vld [vmem:[#allocation2 + $0x18] sm:$0xff]
        %v203 = vld [vmem:[#allocation2 + $0x20] sm:$0xff]
        %v204 = vld [vmem:[#allocation2 + $0x28] sm:$0xff]
        %v205 = vld [vmem:[#allocation2 + $0x30] sm:$0xff]
        %v206 = vld [vmem:[#allocation2 + $0x38] sm:$0xff]
        %v207 = vld [vmem:[#allocation2 + $0x40] sm:$0xff]
        %v208 = vld [vmem:[#allocation2 + $0x48] sm:$0xff]
        %v209 = vld [vmem:[#allocation2 + $0x50] sm:$0xff]
        %v210 = vld [vmem:[#allocation2 + $0x58] sm:$0xff]
        %v211 = vld [vmem:[#allocation2 + $0x60] sm:$0xff]
        %v212 = vld [vmem:[#allocation2 + $0x68] sm:$0xff]
        %v213 = vld [vmem:[#allocation2 + $0x70] sm:$0xff]
        %v214 = vld [vmem:[#allocation2 + $0x78] sm:$0xff]
        %215 = vmatpush.msra.mxu0 %v214
        %216 = vmatpush.msra.mxu0 %v213
        %217 = vmatpush.msra.mxu0 %v212
        %218 = vmatpush.msra.mxu0 %v211
        %219 = vmatpush.msra.mxu0 %v210
        %220 = vmatpush.msra.mxu0 %v209
        %221 = vmatpush.msra.mxu0 %v208
        %222 = vmatpush.msra.mxu0 %v207
        %223 = vmatpush.msra.mxu0 %v206
        %224 = vmatpush.msra.mxu0 %v205
        %225 = vmatpush.msra.mxu0 %v204
        %226 = vmatpush.msra.mxu0 %v203
        %227 = vmatpush.msra.mxu0 %v202
        %228 = vmatpush.msra.mxu0 %v201
        %229 = vmatpush.msra.mxu0 %v200
        %230 = vmatpush.msra.mxu0 %v199
        %231 = vmatmul.f32.gmra.mxu0 %v183
        %v232 = vpop.f32.mrf.mxu0
        %v233 = vadd.f32 0.0, %v232
        %234 = vmatmul.f32.gmra.mxu0 %v184
        %v235 = vpop.f32.mrf.mxu0
        %v236 = vadd.f32 0.0, %v235
        %237 = vmatmul.f32.gmra.mxu0 %v185
        %v238 = vpop.f32.mrf.mxu0
        %v239 = vadd.f32 0.0, %v238
        %240 = vmatmul.f32.gmra.mxu0 %v186
        %v241 = vpop.f32.mrf.mxu0
        %v242 = vadd.f32 0.0, %v241
        %243 = vmatmul.f32.gmra.mxu0 %v187
        %v244 = vpop.f32.mrf.mxu0
        %v245 = vadd.f32 0.0, %v244
        %246 = vmatmul.f32.gmra.mxu0 %v188
        %v247 = vpop.f32.mrf.mxu0
        %v248 = vadd.f32 0.0, %v247
        %249 = vmatmul.f32.gmra.mxu0 %v189
        %v250 = vpop.f32.mrf.mxu0
        %v251 = vadd.f32 0.0, %v250
        %252 = vmatmul.f32.gmra.mxu0 %v190
        %v253 = vpop.f32.mrf.mxu0
        %v254 = vadd.f32 0.0, %v253
        %255 = vmatmul.f32.gmra.mxu0 %v191
        %v256 = vpop.f32.mrf.mxu0
        %v257 = vadd.f32 0.0, %v256
        %258 = vmatmul.f32.gmra.mxu0 %v192
        %v259 = vpop.f32.mrf.mxu0
        %v260 = vadd.f32 0.0, %v259
        %261 = vmatmul.f32.gmra.mxu0 %v193
        %v262 = vpop.f32.mrf.mxu0
        %v263 = vadd.f32 0.0, %v262
        %264 = vmatmul.f32.gmra.mxu0 %v194
        %v265 = vpop.f32.mrf.mxu0
        %v266 = vadd.f32 0.0, %v265
        %267 = vmatmul.f32.gmra.mxu0 %v195
        %v268 = vpop.f32.mrf.mxu0
        %v269 = vadd.f32 0.0, %v268
        %270 = vmatmul.f32.gmra.mxu0 %v196
        %v271 = vpop.f32.mrf.mxu0
        %v272 = vadd.f32 0.0, %v271
        %273 = vmatmul.f32.gmra.mxu0 %v197
        %v274 = vpop.f32.mrf.mxu0
        %v275 = vadd.f32 0.0, %v274
        %276 = vmatmul.f32.gmra.mxu0 %v198
        %v277 = vpop.f32.mrf.mxu0
        %v278 = vadd.f32 0.0, %v277
        %279 = vdwg.mxu0
        %v280 = vadd.f32 %v183, %v233
        %v281 = vadd.f32 %v184, %v236
        %v282 = vadd.f32 %v185, %v239
        %v283 = vadd.f32 %v186, %v242
        %v284 = vadd.f32 %v187, %v245
        %v285 = vadd.f32 %v188, %v248
        %v286 = vadd.f32 %v189, %v251
        %v287 = vadd.f32 %v190, %v254
        %v288 = vadd.f32 %v191, %v257
        %v289 = vadd.f32 %v192, %v260
        %v290 = vadd.f32 %v193, %v263
        %v291 = vadd.f32 %v194, %v266
        %v292 = vadd.f32 %v195, %v269
        %v293 = vadd.f32 %v196, %v272
        %v294 = vadd.f32 %v197, %v275
        %v295 = vadd.f32 %v198, %v278
        %296 = vst [vmem:[%s180] sm:$0xff] %v280
        %297 = vst [vmem:[%s180 + $0x8] sm:$0xff] %v281
        %298 = vst [vmem:[%s180 + $0x10] sm:$0xff] %v282
        %299 = vst [vmem:[%s180 + $0x18] sm:$0xff] %v283
        %300 = vst [vmem:[%s180 + $0x20] sm:$0xff] %v284
        %301 = vst [vmem:[%s180 + $0x28] sm:$0xff] %v285
        %302 = vst [vmem:[%s180 + $0x30] sm:$0xff] %v286
        %303 = vst [vmem:[%s180 + $0x38] sm:$0xff] %v287
        %304 = vst [vmem:[%s180 + $0x40] sm:$0xff] %v288
        %305 = vst [vmem:[%s180 + $0x48] sm:$0xff] %v289
        %306 = vst [vmem:[%s180 + $0x50] sm:$0xff] %v290
        %307 = vst [vmem:[%s180 + $0x58] sm:$0xff] %v291
        %308 = vst [vmem:[%s180 + $0x60] sm:$0xff] %v292
        %309 = vst [vmem:[%s180 + $0x68] sm:$0xff] %v293
        %310 = vst [vmem:[%s180 + $0x70] sm:$0xff] %v294
        %311 = vst [vmem:[%s180 + $0x78] sm:$0xff] %v295
        %s312 = sand.u32 %s75, 1
        %s313 = scalar_lea.sflag [#allocation4], %s312
        %s314 = sand.u32 %s75, 1
        %s315 = smul.addr %s314, 128
        %s316 = scalar_lea.vmem [#allocation7], %s315
        // Predicated region
        $region37: #{tpu_custom_call.1} parent=27 // pred_check
          %p317 = pneg %p85
        $region38: #{tpu_custom_call.1} parent=27 // pred_check_branch
          %319 = sbr.rel (%p317) target = $region40
        $region39: #{tpu_custom_call.1} parent=27 // pred_region
          %s320 = smul.u32 16, %s20
          %322 = vsyncadd %s313, 0
          %s323 = smul.addr %s320, 8
          %s324 = scalar_lea.hbm %s2, %s323
          %s325 = sshll.u32 %s316, 4
          %s326 = int_to_ptr.vmem [resolvable:$true] %s325
          %s327 = sshll.u32 %s324, 4
          %s328 = int_to_ptr.hbm [resolvable:$true] %s327
          %333 = dma.vmem_to_hbm [thread:$0]  %s326, 2048, %s328, %s313, 128, 128, 8
        $region40: #{tpu_custom_call.1} parent=27 // pred_fallthru
          _
      $region28: #{tpu_custom_call.1} parent=5 // pred_fallthru
        _
      %p334 = scmp.le.s32.totalorder 2, %s15
      // Predicated region
      $region41: #{tpu_custom_call.1} parent=5 // pred_check
        %p335 = pneg %p334
      $region42: #{tpu_custom_call.1} parent=5 // pred_check_branch
        %337 = sbr.rel (%p335) target = $region44
      $region43: #{tpu_custom_call.1} parent=5 // pred_region
        %s338 = ssub.s32 %s15, 2
        // Predicated region
        $region45: #{tpu_custom_call.1} parent=43 // pred_check
          %p339 = pneg %p91
        $region46: #{tpu_custom_call.1} parent=43 // pred_check_branch
          %341 = sbr.rel (%p339) target = $region48
        $region47: #{tpu_custom_call.1} parent=43 // pred_region
          %s342 = sand.u32 %s76, 1
          %s343 = scalar_lea.sflag [#allocation4], %s342
          %s344 = sand.u32 %s76, 1
          %s345 = smul.addr %s344, 128
          %s346 = scalar_lea.vmem [#allocation7], %s345
          %348 = dma.done %s343, 2048
        $region48: #{tpu_custom_call.1} parent=43 // pred_fallthru
          _
      $region44: #{tpu_custom_call.1} parent=5 // pred_fallthru
        _
    $region6: #{tpu_custom_call.1} parent=1 // loop_footer
      %s19 = sadd.s32 1, %s15
    $region7: #{tpu_custom_call.1} parent=1 // loop_footer_branch
      %14 = sbr.rel target = $region3
    $region8: #{tpu_custom_call.1} parent=1 // loop_exit
      _
    %349 = vsyncpa [#allocation3], 1
    %s350 = scalar_lea.sflag [#allocation3], 1
    %351 = vsyncpa %s350, 1
    %352 = vsyncpa [#allocation6], 1
    %s353 = scalar_lea.sflag [#allocation6], 1
    %354 = vsyncpa %s353, 1
    %355 = vsyncpa [#allocation4], 1
    %s356 = scalar_lea.sflag [#allocation4], 1
    %357 = vsyncpa %s356, 1

</llo_original>
